<compile_context>
chip_gen: v5e
topology: v5e:2x2
jax: 0.10.0
libtpu: 0.0.40
codegen_flags: <defaults>
</compile_context>

<pallas_src>
import functools

import jax
import jax.numpy as jnp
from jax import lax
from jax.experimental import pallas as pl
from jax.experimental.pallas import tpu as pltpu

_EPS = 1e-5
_LANE = 128             # lane width (last dim of every tile)
_SUB = 8                # sublane count of one f32 vreg
_MAX_BLOCK_ROWS = 2048  # 2048x128 f32 = 1 MiB/input tile; 4 MiB double-buffered
_NUM_SHARDS = 2         # leading "parallel" grid axis (v7x megacore; serial elsewhere)


def _dice_kernel(p_ref, t_ref, inter_ref, spre_ref, star_ref, *,
                 total, block_rows, blocks_per_shard, n_blocks, needs_mask):
    c = pl.program_id(0)   # shard (TensorCore on v7x)
    j = pl.program_id(1)   # row-block within the shard

    # Output blocks are resident across the inner ("arbitrary") axis and double
    # as per-lane accumulators; zero them on the first inner step of each shard.
    @pl.when(j == 0)
    def _init():
        inter_ref[...] = jnp.zeros_like(inter_ref)
        spre_ref[...] = jnp.zeros_like(spre_ref)
        star_ref[...] = jnp.zeros_like(star_ref)

    pre = jax.nn.sigmoid(p_ref[...].astype(jnp.float32))   # (block_rows, 128)
    tar = t_ref[...].astype(jnp.float32)

    groups = block_rows // _SUB

    def _accum(pre_v, tar_v):
        # Leading-axis reductions are plain VPU vreg adds (no cross-lane XLU);
        # the expensive cross-lane reduce happens once, in the wrapper.
        inter_ref[...] += jnp.sum((pre_v * tar_v).reshape(groups, _SUB, _LANE), axis=0)
        spre_ref[...] += jnp.sum(pre_v.reshape(groups, _SUB, _LANE), axis=0)
        star_ref[...] += jnp.sum(tar_v.reshape(groups, _SUB, _LANE), axis=0)

    if needs_mask:
        blk = c * blocks_per_shard + j
        # Only the logically-last block (and any clamped duplicate block handed
        # to the spill-over shard step) can contain padded / OOB elements.
        is_edge = blk >= n_blocks - 1

        @pl.when(jnp.logical_not(is_edge))
        def _full_block():
            _accum(pre, tar)

        @pl.when(is_edge)
        def _edge_block():
            # Global element index of every lane in this tile.
            # TODO(synk): int32 indexing limits inputs to < 2**31 elements.
            row = lax.broadcasted_iota(jnp.int32, (block_rows, _LANE), 0)
            lane = lax.broadcasted_iota(jnp.int32, (block_rows, _LANE), 1)
            gidx = (blk * block_rows + row) * _LANE + lane
            valid = jnp.logical_and(blk < n_blocks, gidx < total)
            _accum(jnp.where(valid, pre, 0.0), jnp.where(valid, tar, 0.0))
    else:
        _accum(pre, tar)


def dice_loss(predict, target, *, max_block_rows=_MAX_BLOCK_ROWS):
    """Pallas implementation of DiceLoss.forward. Returns a float32 scalar."""
    assert predict.shape == target.shape, (
        "The size of predict and target must be equal.")

    total = int(predict.size)
    p = predict.reshape(-1)      # native dtype; upcast happens inside the kernel
    t = target.reshape(-1)

    # Pad only up to the next 8*128-element boundary (< 1024 extra elements).
    # Padded elements are masked inside the kernel, so pad values are irrelevant.
    chunk = _SUB * _LANE
    padded_total = pl.cdiv(total, chunk) * chunk
    if padded_total != total:
        pad = padded_total - total
        p = jnp.pad(p, (0, pad))
        t = jnp.pad(t, (0, pad))

    rows = padded_total // _LANE                 # multiple of 8
    p2 = p.reshape(rows, _LANE)
    t2 = t.reshape(rows, _LANE)

    block_rows = min(int(max_block_rows), rows)  # multiple of 8, or == rows
    n_blocks = pl.cdiv(rows, block_rows)
    num_shards = _NUM_SHARDS if n_blocks >= _NUM_SHARDS else 1
    blocks_per_shard = pl.cdiv(n_blocks, num_shards)

    needs_mask = (padded_total != total
                  or n_blocks * block_rows != rows
                  or blocks_per_shard * num_shards != n_blocks)

    def in_map(c, j):
        blk = c * blocks_per_shard + j
        # Clamp so a shard's spill-over step re-reads a valid block; its
        # contribution is fully masked out inside the kernel.
        return (jnp.minimum(blk, n_blocks - 1), 0)

    out_map = lambda c, j: (c, 0)   # per-shard resident accumulator block

    kernel = functools.partial(
        _dice_kernel,
        total=total,
        block_rows=block_rows,
        blocks_per_shard=blocks_per_shard,
        n_blocks=n_blocks,
        needs_mask=needs_mask,
    )

    part_shape = jax.ShapeDtypeStruct((num_shards * _SUB, _LANE), jnp.float32)
    part_spec = pl.BlockSpec((_SUB, _LANE), out_map)

    inter_p, spre_p, star_p = pl.pallas_call(
        kernel,
        out_shape=(part_shape, part_shape, part_shape),
        grid_spec=pltpu.PrefetchScalarGridSpec(
            num_scalar_prefetch=0,
            grid=(num_shards, blocks_per_shard),
            in_specs=[
                pl.BlockSpec((block_rows, _LANE), in_map),
                pl.BlockSpec((block_rows, _LANE), in_map),
            ],
            out_specs=[part_spec, part_spec, part_spec],
        ),
        compiler_params=pltpu.CompilerParams(
            dimension_semantics=("parallel", "arbitrary")),
    )(p2, t2)

    intersection = jnp.sum(inter_p)
    union = jnp.sum(spre_p) + jnp.sum(star_p)
    return 1.0 - 2.0 * (intersection + _EPS) / (union + _EPS)


def _dice_loss_ref(predict, target):
    num = predict.shape[0]
    pre = jax.nn.sigmoid(predict.astype(jnp.float32)).reshape(num, -1)
    tar = target.astype(jnp.float32).reshape(num, -1)
    intersection = (pre * tar).sum(-1).sum()
    union = (pre + tar).sum(-1).sum()
    return 1.0 - 2.0 * (intersection + _EPS) / (union + _EPS)


if __name__ == "__main__":
    key = jax.random.PRNGKey(0)
    k1, k2, k3, k4, k5, k6 = jax.random.split(key, 6)

    # 1) Small NCHW case (aligned fast path: no masking, single shard).
    predict = jax.random.normal(k1, (2, 4, 16, 16), dtype=jnp.float32)
    target = (jax.random.uniform(k2, (2, 4, 16, 16)) > 0.5).astype(jnp.float32)
    out = jax.block_until_ready(dice_loss(predict, target))
    ref = jax.block_until_ready(_dice_loss_ref(predict, target))
    assert jnp.allclose(out, ref, atol=2e-5, rtol=1e-4), (out, ref)

    # 2) Odd spatial size: exercises the in-kernel tail mask.
    predict2 = jax.random.normal(k3, (2, 3, 17, 19), dtype=jnp.float32)
    target2 = (jax.random.uniform(k4, (2, 3, 17, 19)) > 0.5).astype(jnp.float32)
    out2 = jax.block_until_ready(dice_loss(predict2, target2))
    ref2 = jax.block_until_ready(_dice_loss_ref(predict2, target2))
    assert jnp.allclose(out2, ref2, atol=2e-5, rtol=1e-4), (out2, ref2)

    # 3) Tiny block size forces multi-block + 2-shard grid (incl. one fully
    #    masked duplicate block), exercising the megacore path at small shapes.
    predict3 = jax.random.normal(k5, (2, 4, 16, 18), dtype=jnp.float32)
    target3 = (jax.random.uniform(k6, (2, 4, 16, 18)) > 0.5).astype(jnp.float32)
    out3 = jax.block_until_ready(dice_loss(predict3, target3, max_block_rows=8))
    ref3 = jax.block_until_ready(_dice_loss_ref(predict3, target3))
    assert jnp.allclose(out3, ref3, atol=2e-5, rtol=1e-4), (out3, ref3)

    print("KERNEL_OK")
</pallas_src>

<mosaic_0001>
module attributes {stable_mosaic.version = 11 : i64} {
  func.func @_dice_kernel(%arg0: i32, %arg1: i32, %arg2: memref<16x128xf32, #tpu.memory_space<vmem>>, %arg3: memref<16x128xf32, #tpu.memory_space<vmem>>, %arg4: memref<8x128xf32, #tpu.memory_space<vmem>>, %arg5: memref<8x128xf32, #tpu.memory_space<vmem>>, %arg6: memref<8x128xf32, #tpu.memory_space<vmem>>) attributes {dimension_semantics = [#tpu.dimension_semantics<parallel>, #tpu.dimension_semantics<arbitrary>], iteration_bounds = array<i64: 1, 1>, scalar_prefetch = 0 : i64, scratch_operands = 0 : i64, tpu.core_type = #tpu.core_type<tc>, window_params = [{transform_indices = @transform_0, window_bounds = array<i64: 16, 128>}, {transform_indices = @transform_1, window_bounds = array<i64: 16, 128>}, {transform_indices = @transform_2, window_bounds = array<i64: 8, 128>}, {transform_indices = @transform_3, window_bounds = array<i64: 8, 128>}, {transform_indices = @transform_4, window_bounds = array<i64: 8, 128>}]} {
    %c0_i32 = arith.constant 0 : i32
    %0 = arith.cmpi eq, %arg1, %c0_i32 : i32
    %1 = arith.extui %0 : i1 to i32
    %c0_i32_0 = arith.constant 0 : i32
    %2 = arith.cmpi ne, %1, %c0_i32_0 : i32
    scf.if %2 {
      %cst_19 = arith.constant 0.000000e+00 : f32
      %26 = vector.broadcast %cst_19 : f32 to vector<8x128xf32>
      %c0_20 = arith.constant 0 : index
      %c0_21 = arith.constant 0 : index
      %27 = vector.load %arg4[%c0_20, %c0_21] : memref<8x128xf32, #tpu.memory_space<vmem>>, vector<8x128xf32>
      tpu.vector_store %arg4[%c0_20, %c0_21], %26 {strides = array<i32>} : memref<8x128xf32, #tpu.memory_space<vmem>>, vector<8x128xf32>,
      %cst_22 = arith.constant 0.000000e+00 : f32
      %28 = vector.broadcast %cst_22 : f32 to vector<8x128xf32>
      %c0_23 = arith.constant 0 : index
      %c0_24 = arith.constant 0 : index
      %29 = vector.load %arg5[%c0_23, %c0_24] : memref<8x128xf32, #tpu.memory_space<vmem>>, vector<8x128xf32>
      tpu.vector_store %arg5[%c0_23, %c0_24], %28 {strides = array<i32>} : memref<8x128xf32, #tpu.memory_space<vmem>>, vector<8x128xf32>,
      %cst_25 = arith.constant 0.000000e+00 : f32
      %30 = vector.broadcast %cst_25 : f32 to vector<8x128xf32>
      %c0_26 = arith.constant 0 : index
      %c0_27 = arith.constant 0 : index
      %31 = vector.load %arg6[%c0_26, %c0_27] : memref<8x128xf32, #tpu.memory_space<vmem>>, vector<8x128xf32>
      tpu.vector_store %arg6[%c0_26, %c0_27], %30 {strides = array<i32>} : memref<8x128xf32, #tpu.memory_space<vmem>>, vector<8x128xf32>,
    } else {
    }
    %c0 = arith.constant 0 : index
    %c0_1 = arith.constant 0 : index
    %3 = vector.load %arg2[%c0, %c0_1] : memref<16x128xf32, #tpu.memory_space<vmem>>, vector<16x128xf32>
    %4 = arith.negf %3 : vector<16x128xf32>
    %5 = math.exp %4 : vector<16x128xf32>
    %cst = arith.constant 1.000000e+00 : f32
    %6 = vector.broadcast %cst : f32 to vector<16x128xf32>
    %7 = arith.addf %6, %5 : vector<16x128xf32>
    %8 = arith.divf %6, %7 : vector<16x128xf32>
    %c0_2 = arith.constant 0 : index
    %c0_3 = arith.constant 0 : index
    %9 = vector.load %arg3[%c0_2, %c0_3] : memref<16x128xf32, #tpu.memory_space<vmem>>, vector<16x128xf32>
    %c0_4 = arith.constant 0 : index
    %c0_5 = arith.constant 0 : index
    %10 = vector.load %arg4[%c0_4, %c0_5] : memref<8x128xf32, #tpu.memory_space<vmem>>, vector<8x128xf32>
    %11 = arith.mulf %8, %9 : vector<16x128xf32>
    %12 = vector.shape_cast %11 : vector<16x128xf32> to vector<2x8x128xf32>
    %cst_6 = arith.constant dense<0.000000e+00> : vector<8x128xf32>
    %13 = vector.multi_reduction <add>, %12, %cst_6 [0] : vector<2x8x128xf32> to vector<8x128xf32>
    %14 = arith.addf %10, %13 : vector<8x128xf32>
    %c0_7 = arith.constant 0 : index
    %c0_8 = arith.constant 0 : index
    %15 = vector.load %arg4[%c0_7, %c0_8] : memref<8x128xf32, #tpu.memory_space<vmem>>, vector<8x128xf32>
    tpu.vector_store %arg4[%c0_7, %c0_8], %14 {strides = array<i32>} : memref<8x128xf32, #tpu.memory_space<vmem>>, vector<8x128xf32>,
    %c0_9 = arith.constant 0 : index
    %c0_10 = arith.constant 0 : index
    %16 = vector.load %arg5[%c0_9, %c0_10] : memref<8x128xf32, #tpu.memory_space<vmem>>, vector<8x128xf32>
    %17 = vector.shape_cast %8 : vector<16x128xf32> to vector<2x8x128xf32>
    %cst_11 = arith.constant dense<0.000000e+00> : vector<8x128xf32>
    %18 = vector.multi_reduction <add>, %17, %cst_11 [0] : vector<2x8x128xf32> to vector<8x128xf32>
    %19 = arith.addf %16, %18 : vector<8x128xf32>
    %c0_12 = arith.constant 0 : index
    %c0_13 = arith.constant 0 : index
    %20 = vector.load %arg5[%c0_12, %c0_13] : memref<8x128xf32, #tpu.memory_space<vmem>>, vector<8x128xf32>
    tpu.vector_store %arg5[%c0_12, %c0_13], %19 {strides = array<i32>} : memref<8x128xf32, #tpu.memory_space<vmem>>, vector<8x128xf32>,
    %c0_14 = arith.constant 0 : index
    %c0_15 = arith.constant 0 : index
    %21 = vector.load %arg6[%c0_14, %c0_15] : memref<8x128xf32, #tpu.memory_space<vmem>>, vector<8x128xf32>
    %22 = vector.shape_cast %9 : vector<16x128xf32> to vector<2x8x128xf32>
    %cst_16 = arith.constant dense<0.000000e+00> : vector<8x128xf32>
    %23 = vector.multi_reduction <add>, %22, %cst_16 [0] : vector<2x8x128xf32> to vector<8x128xf32>
    %24 = arith.addf %21, %23 : vector<8x128xf32>
    %c0_17 = arith.constant 0 : index
    %c0_18 = arith.constant 0 : index
    %25 = vector.load %arg6[%c0_17, %c0_18] : memref<8x128xf32, #tpu.memory_space<vmem>>, vector<8x128xf32>
    tpu.vector_store %arg6[%c0_17, %c0_18], %24 {strides = array<i32>} : memref<8x128xf32, #tpu.memory_space<vmem>>, vector<8x128xf32>,
    return
  }
  func.func @transform_0(%arg0: i32, %arg1: i32) -> (i32, i32) {
    %c1_i32 = arith.constant 1 : i32
    %0 = arith.muli %arg0, %c1_i32 : i32
    %1 = arith.addi %0, %arg1 : i32
    %c0_i32 = arith.constant 0 : i32
    %2 = arith.minsi %1, %c0_i32 : i32
    %c0_i32_0 = arith.constant 0 : i32
    %c0_i32_1 = arith.constant 0 : i32
    return %2, %c0_i32_0 : i32, i32
  }
  func.func @transform_1(%arg0: i32, %arg1: i32) -> (i32, i32) {
    %c1_i32 = arith.constant 1 : i32
    %0 = arith.muli %arg0, %c1_i32 : i32
    %1 = arith.addi %0, %arg1 : i32
    %c0_i32 = arith.constant 0 : i32
    %2 = arith.minsi %1, %c0_i32 : i32
    %c0_i32_0 = arith.constant 0 : i32
    %c0_i32_1 = arith.constant 0 : i32
    return %2, %c0_i32_0 : i32, i32
  }
  func.func @transform_2(%arg0: i32, %arg1: i32) -> (i32, i32) {
    %c0_i32 = arith.constant 0 : i32
    %c0_i32_0 = arith.constant 0 : i32
    return %arg0, %c0_i32 : i32, i32
  }
  func.func @transform_3(%arg0: i32, %arg1: i32) -> (i32, i32) {
    %c0_i32 = arith.constant 0 : i32
    %c0_i32_0 = arith.constant 0 : i32
    return %arg0, %c0_i32 : i32, i32
  }
  func.func @transform_4(%arg0: i32, %arg1: i32) -> (i32, i32) {
    %c0_i32 = arith.constant 0 : i32
    %c0_i32_0 = arith.constant 0 : i32
    return %arg0, %c0_i32 : i32, i32
  }
}

</mosaic_0001>

<llo_original>
// kernel: tpu_custom_call.1
$region0: #{tpu_custom_call.1}
  #allocation0 [shape = 'u32[]', space=smem, size = 0x4, offset = 0x4, fixed_abs, tag = 'smem constant byte address 0x4 - core index']
  #allocation1 [shape = 'u32[72,128]{1,0:T(1,128)}', space=vmem, size = 0x9000, scoped, tag = 'internal scratch']
  %s0 = inlined_call_operand.hbm [shape: f32[16,128], index: 0, kind: input, shape index: {}]
  %s1 = inlined_call_operand.hbm [shape: f32[16,128], index: 1, kind: input, shape index: {}]
  %s2 = inlined_call_operand.hbm [shape: f32[8,128], index: 2, kind: output, shape index: {0}]
  %s3 = inlined_call_operand.hbm [shape: f32[8,128], index: 3, kind: output, shape index: {1}]
  %s4 = inlined_call_operand.hbm [shape: f32[8,128], index: 4, kind: output, shape index: {2}]
  %5 = xla_tuple %s2, %s3, %s4
  %s6 = sld [smem:[#allocation0]]
  $region46: #{tpu_custom_call.1} parent=0
    _
  %s8 = ssub.s32 1, %s6
  %s9 = scalar_select 0, %s8, %s6
  $region1: #{tpu_custom_call.1} parent=0
    #allocation2 [shape = 'u8[8192]{0}', space=vmem, size = 0x2000, scoped, tag = 'input window, operand 0, single buffered']
    #allocation3 [shape = 's32[1]{0}', space=sflag, size = 0x4, scoped, tag = 'scoped memory for tpu_custom_call.1']
    #allocation4 [shape = 's32[1]{0}', space=sflag, size = 0x4, scoped, tag = 'scoped memory for tpu_custom_call.1']
    #allocation5 [shape = 'u8[8192]{0}', space=vmem, size = 0x2000, scoped, tag = 'input window, operand 1, single buffered']
    #allocation6 [shape = 's32[1]{0}', space=sflag, size = 0x4, scoped, tag = 'scoped memory for tpu_custom_call.1']
    #allocation7 [shape = 'u8[4096]{0}', space=vmem, size = 0x1000, scoped, tag = 'output window, operand 0, single buffered']
    #allocation8 [shape = 'u8[4096]{0}', space=vmem, size = 0x1000, scoped, tag = 'output window, operand 1, single buffered']
    #allocation9 [shape = 's32[1]{0}', space=sflag, size = 0x4, scoped, tag = 'scoped memory for tpu_custom_call.1']
    #allocation10 [shape = 'u8[4096]{0}', space=vmem, size = 0x1000, scoped, tag = 'output window, operand 2, single buffered']
    %10 = vsyncpa [#allocation3], 0
    %11 = vsyncpa [#allocation6], 0
    %12 = vsyncpa [#allocation4], 0
    %13 = vsyncpa [#allocation9], 0
    // Predicated region
    $region2: #{tpu_custom_call.1} parent=1 // pred_check
      _
    $region3: #{tpu_custom_call.1} parent=1 // pred_check_branch
      %15 = sbr.rel (0) target = $region5
    $region4: #{tpu_custom_call.1} parent=1 // pred_region
      %s16 = sadd.s32 0, 0
      %p17 = scmp.lt.s32.totalorder %s16, 0
      %s18 = scalar_select %p17, %s16, 0
      %s19 = smul.u32 2, %s18
      %21 = vsyncadd [#allocation3], 0
      %s22 = smul.addr %s19, 8
      %s23 = scalar_lea.hbm %s0, %s22
      %s24 = sshll.u32 %s23, 4
      %s25 = int_to_ptr.hbm [resolvable:$true] %s24
      %s26 = sshll.u32 [#allocation2], 4
      %s27 = int_to_ptr.vmem [resolvable:$true] %s26
      %32 = dma.hbm_to_vmem [thread:$0]  %s25, 256, %s27, [#allocation3], 128, 128, 8
    $region5: #{tpu_custom_call.1} parent=1 // pred_fallthru
      _
    // Predicated region
    $region6: #{tpu_custom_call.1} parent=1 // pred_check
      _
    $region7: #{tpu_custom_call.1} parent=1 // pred_check_branch
      %34 = sbr.rel (0) target = $region9
    $region8: #{tpu_custom_call.1} parent=1 // pred_region
      %s35 = sadd.s32 0, 0
      %p36 = scmp.lt.s32.totalorder %s35, 0
      %s37 = scalar_select %p36, %s35, 0
      %s38 = smul.u32 2, %s37
      %40 = vsyncadd [#allocation6], 0
      %s41 = smul.addr %s38, 8
      %s42 = scalar_lea.hbm %s1, %s41
      %s43 = sshll.u32 %s42, 4
      %s44 = int_to_ptr.hbm [resolvable:$true] %s43
      %s45 = sshll.u32 [#allocation5], 4
      %s46 = int_to_ptr.vmem [resolvable:$true] %s45
      %51 = dma.hbm_to_vmem [thread:$0]  %s44, 256, %s46, [#allocation6], 128, 128, 8
    $region9: #{tpu_custom_call.1} parent=1 // pred_fallthru
      _
    // Predicated region
    $region10: #{tpu_custom_call.1} parent=1 // pred_check
      _
    $region11: #{tpu_custom_call.1} parent=1 // pred_check_branch
      %53 = sbr.rel (0) target = $region13
    $region12: #{tpu_custom_call.1} parent=1 // pred_region
      %55 = dma.done [#allocation3], 256
    $region13: #{tpu_custom_call.1} parent=1 // pred_fallthru
      _
    // Predicated region
    $region14: #{tpu_custom_call.1} parent=1 // pred_check
      _
    $region15: #{tpu_custom_call.1} parent=1 // pred_check_branch
      %57 = sbr.rel (0) target = $region17
    $region16: #{tpu_custom_call.1} parent=1 // pred_region
      %59 = dma.done [#allocation6], 256
    $region17: #{tpu_custom_call.1} parent=1 // pred_fallthru
      _
    %s60 = sadd.s32 0, 0
    %p61 = scmp.lt.s32.totalorder %s60, 0
    %s62 = scalar_select %p61, %s60, 0
    %s63 = smul.u32 2, %s62
    %s64 = sadd.s32 0, 0
    %p65 = scmp.lt.s32.totalorder %s64, 0
    %s66 = scalar_select %p65, %s64, 0
    %s67 = smul.u32 2, %s66
    %p68 = scmp.eq.s32.totalorder 0, 0
    // Predicated region
    $region18: #{tpu_custom_call.1} parent=1 // pred_check
      %p69 = pneg %p68
    $region19: #{tpu_custom_call.1} parent=1 // pred_check_branch
      %71 = sbr.rel (%p69) target = $region21
    $region20: #{tpu_custom_call.1} parent=1 // pred_region
      %72 = vst [vmem:[#allocation7] sm:$0xff] 0.0
      %73 = vst [vmem:[#allocation8] sm:$0xff] 0.0
      %74 = vst [vmem:[#allocation10] sm:$0xff] 0.0
    $region21: #{tpu_custom_call.1} parent=1 // pred_fallthru
      _
    %v75 = vld [vmem:[#allocation2] sm:$0xff]
    %v76 = vld [vmem:[#allocation2 + $0x8] sm:$0xff]
    %v77 = vxor.u32 %v75, 2147483648
    %v78 = vxor.u32 %v76, 2147483648
    %v79 = vmul.f32 %v77, 1.442695
    %v80 = vpow.pop %v79
    %v81 = vmul.f32 %v78, 1.442695
    %v82 = vpow.pop %v81
    %v83 = vadd.f32 %v80, 1.0
    %v84 = vadd.f32 %v82, 1.0
    %v85 = vrcp.pop %v83
    %v86 = vmul.f32 %v83, %v85
    %v87 = vsub.f32 1.0, %v86
    %v88 = vmul.f32 %v85, %v87
    %v89 = vadd.f32 %v85, %v88
    %vm90 = vweird.f32 %v83
    %vm91 = vweird.f32 %v85
    %vm92 = vmor %vm90, %vm91
    %v93 = vsel %vm92, %v85, %v89
    %v94 = vand.u32 2147483647, %v83
    %vm95 = vcmp.eq.f32.partialorder %v94, 8.507059e+37
    %v96 = vand.u32 %v83, 2147483648
    %v97 = vor.u32 1.1754944e-38, %v96
    %v98 = vsel %vm95, %v97, %v93
    %v99 = vmul.f32 1.0, %v98
    %v100 = vrcp.pop %v84
    %v101 = vmul.f32 %v84, %v100
    %v102 = vsub.f32 1.0, %v101
    %v103 = vmul.f32 %v100, %v102
    %v104 = vadd.f32 %v100, %v103
    %vm105 = vweird.f32 %v84
    %vm106 = vweird.f32 %v100
    %vm107 = vmor %vm105, %vm106
    %v108 = vsel %vm107, %v100, %v104
    %v109 = vand.u32 2147483647, %v84
    %vm110 = vcmp.eq.f32.partialorder %v109, 8.507059e+37
    %v111 = vand.u32 %v84, 2147483648
    %v112 = vor.u32 1.1754944e-38, %v111
    %v113 = vsel %vm110, %v112, %v108
    %v114 = vmul.f32 1.0, %v113
    %v115 = vld [vmem:[#allocation5] sm:$0xff]
    %v116 = vld [vmem:[#allocation5 + $0x8] sm:$0xff]
    %v117 = vld [vmem:[#allocation7] sm:$0xff]
    %v118 = vmul.f32 %v99, %v115
    %v119 = vmul.f32 %v114, %v116
    %v120 = vadd.f32 %v118, %v119
    %v121 = vadd.f32 %v117, %v120
    %122 = vst [vmem:[#allocation7] sm:$0xff] %v121
    %v123 = vld [vmem:[#allocation8] sm:$0xff]
    %v124 = vadd.f32 %v99, %v114
    %v125 = vadd.f32 %v123, %v124
    %126 = vst [vmem:[#allocation8] sm:$0xff] %v125
    %v127 = vld [vmem:[#allocation10] sm:$0xff]
    %v128 = vadd.f32 %v115, %v116
    %v129 = vadd.f32 %v127, %v128
    %130 = vst [vmem:[#allocation10] sm:$0xff] %v129
    // Predicated region
    $region22: #{tpu_custom_call.1} parent=1 // pred_check
      _
    $region23: #{tpu_custom_call.1} parent=1 // pred_check_branch
      %132 = sbr.rel (0) target = $region25
    $region24: #{tpu_custom_call.1} parent=1 // pred_region
      %134 = vsyncadd [#allocation4], 0
      %s136 = sshll.u32 [#allocation7], 4
      %s137 = int_to_ptr.vmem [resolvable:$true] %s136
      %s138 = sshll.u32 %s2, 4
      %s139 = int_to_ptr.hbm [resolvable:$true] %s138
      %141 = dma.vmem_to_hbm [thread:$0]  %s137, 128, %s139, [#allocation4]
    $region25: #{tpu_custom_call.1} parent=1 // pred_fallthru
      _
    // Predicated region
    $region26: #{tpu_custom_call.1} parent=1 // pred_check
      _
    $region27: #{tpu_custom_call.1} parent=1 // pred_check_branch
      %143 = sbr.rel (0) target = $region29
    $region28: #{tpu_custom_call.1} parent=1 // pred_region
      %145 = vsyncadd [#allocation9], 0
      %s147 = sshll.u32 [#allocation8], 4
      %s148 = int_to_ptr.vmem [resolvable:$true] %s147
      %s149 = sshll.u32 %s3, 4
      %s150 = int_to_ptr.hbm [resolvable:$true] %s149
      %152 = dma.vmem_to_hbm [thread:$0]  %s148, 128, %s150, [#allocation9]
    $region29: #{tpu_custom_call.1} parent=1 // pred_fallthru
      _
    // Predicated region
    $region30: #{tpu_custom_call.1} parent=1 // pred_check
      _
    $region31: #{tpu_custom_call.1} parent=1 // pred_check_branch
      %154 = sbr.rel (0) target = $region33
    $region32: #{tpu_custom_call.1} parent=1 // pred_region
      %156 = vsyncadd [#allocation9], 0
      %s158 = sshll.u32 [#allocation10], 4
      %s159 = int_to_ptr.vmem [resolvable:$true] %s158
      %s160 = sshll.u32 %s4, 4
      %s161 = int_to_ptr.hbm [resolvable:$true] %s160
      %163 = dma.vmem_to_hbm [thread:$0]  %s159, 128, %s161, [#allocation9]
    $region33: #{tpu_custom_call.1} parent=1 // pred_fallthru
      _
    // Predicated region
    $region34: #{tpu_custom_call.1} parent=1 // pred_check
      _
    $region35: #{tpu_custom_call.1} parent=1 // pred_check_branch
      %165 = sbr.rel (0) target = $region37
    $region36: #{tpu_custom_call.1} parent=1 // pred_region
      %167 = dma.done [#allocation4], 128
    $region37: #{tpu_custom_call.1} parent=1 // pred_fallthru
      _
    // Predicated region
    $region38: #{tpu_custom_call.1} parent=1 // pred_check
      _
    $region39: #{tpu_custom_call.1} parent=1 // pred_check_branch
      %169 = sbr.rel (0) target = $region41
    $region40: #{tpu_custom_call.1} parent=1 // pred_region
      %171 = dma.done [#allocation9], 128
    $region41: #{tpu_custom_call.1} parent=1 // pred_fallthru
      _
    // Predicated region
    $region42: #{tpu_custom_call.1} parent=1 // pred_check
      _
    $region43: #{tpu_custom_call.1} parent=1 // pred_check_branch
      %173 = sbr.rel (0) target = $region45
    $region44: #{tpu_custom_call.1} parent=1 // pred_region
      %175 = dma.done [#allocation9], 128
    $region45: #{tpu_custom_call.1} parent=1 // pred_fallthru
      _
    %176 = vsyncpa [#allocation3], 1
    %177 = vsyncpa [#allocation6], 1
    %178 = vsyncpa [#allocation4], 1
    %179 = vsyncpa [#allocation9], 1

</llo_original>
